<compile_context>
chip_gen: v6e
topology: v6e:2x2x1
jax: 0.10.0
libtpu: 0.0.40
codegen_flags: <defaults>
</compile_context>

<pallas_src>
import math
import functools

import jax
import jax.numpy as jnp
from jax.experimental import pallas as pl
from jax.experimental.pallas import tpu as pltpu


def _get_pad(size: int, multiple: int):
    new_size = math.ceil(size / multiple) * multiple
    pad = new_size - size
    left = pad // 2
    right = pad - left
    return left, right


def _center_pad_kernel_fused(x_ref, o_ref, *, pad_top, pad_bot, pad_left, pad_right):
    """Build the padded tile fully in registers -> one full-tile store."""
    x = x_ref[...]                      # (P, H, W)
    p, h, w = x.shape
    dt = x.dtype

    # Pad W (lane dim).
    parts = [x]
    if pad_left:
        parts.insert(0, jnp.zeros((p, h, pad_left), dt))
    if pad_right:
        parts.append(jnp.zeros((p, h, pad_right), dt))
    xw = parts[0] if len(parts) == 1 else jnp.concatenate(parts, axis=2)

    # Pad H (sublane dim).
    wp = w + pad_left + pad_right
    parts = [xw]
    if pad_top:
        parts.insert(0, jnp.zeros((p, pad_top, wp), dt))
    if pad_bot:
        parts.append(jnp.zeros((p, pad_bot, wp), dt))
    out = parts[0] if len(parts) == 1 else jnp.concatenate(parts, axis=1)

    o_ref[...] = out                    # single unmasked full-tile store


def _center_pad_kernel_striped(x_ref, o_ref, *, pad_top, pad_bot, pad_left, pad_right):
    """Fallback: zero only the four border stripes + one interior store
    (still avoids double-writing the interior)."""
    p, h, w = x_ref.shape
    hp = pad_top + h + pad_bot
    wp = pad_left + w + pad_right
    dt = o_ref.dtype

    if pad_top:
        o_ref[:, :pad_top, :] = jnp.zeros((p, pad_top, wp), dt)
    if pad_bot:
        o_ref[:, pad_top + h:, :] = jnp.zeros((p, pad_bot, wp), dt)
    if pad_left:
        o_ref[:, :, :pad_left] = jnp.zeros((p, hp, pad_left), dt)
    if pad_right:
        o_ref[:, :, pad_left + w:] = jnp.zeros((p, hp, pad_right), dt)
    o_ref[:, pad_top:pad_top + h, pad_left:pad_left + w] = x_ref[...]


def _choose_plane_tile(n_planes: int, bytes_per_plane: int, budget_bytes: int) -> int:
    """Largest divisor of n_planes whose (in + out) block fits the VMEM budget,
    while keeping >= 2 grid steps (megacore) whenever possible."""
    max_planes = max(1, budget_bytes // max(1, bytes_per_plane))
    tile = 1
    for d in range(1, n_planes + 1):
        if n_planes % d == 0 and d <= max_planes:
            tile = d
    if tile == n_planes and n_planes > 1:
        for d in range(n_planes // 2, 0, -1):
            if n_planes % d == 0:
                tile = d
                break
    return tile


def center_padding(x: jax.Array, multiple: int = 14) -> jax.Array:
    """Pallas implementation of CenterPadding.forward for NCHW inputs."""
    N, C, H, W = x.shape
    pt, pb = _get_pad(H, multiple)
    pw_l, pw_r = _get_pad(W, multiple)
    Hp = H + pt + pb
    Wp = W + pw_l + pw_r

    if pt == pb == pw_l == pw_r == 0:
        # Already a multiple of `multiple` on both spatial dims: no-op.
        return x

    # Collapse N and C into one plane axis (free, contiguous leading dims).
    NP = N * C
    x_flat = x.reshape(NP, H, W)

    itemsize = x.dtype.itemsize
    bytes_per_plane = (H * W + Hp * Wp) * itemsize
    # ~4 MiB of (input + output) per block; double-buffered => ~8 MiB VMEM,
    # safe under the scoped-VMEM default on v5e (16 MiB) and v6e/v7x (32 MiB).
    p_tile = _choose_plane_tile(NP, bytes_per_plane, budget_bytes=4 * 1024 * 1024)
    grid = (NP // p_tile,)

    def run(kernel_fn):
        return pl.pallas_call(
            functools.partial(
                kernel_fn,
                pad_top=pt, pad_bot=pb, pad_left=pw_l, pad_right=pw_r,
            ),
            out_shape=jax.ShapeDtypeStruct((NP, Hp, Wp), x.dtype),
            grid=grid,
            in_specs=[pl.BlockSpec((p_tile, H, W), lambda i: (i, 0, 0))],
            out_specs=pl.BlockSpec((p_tile, Hp, Wp), lambda i: (i, 0, 0)),
            compiler_params=pltpu.CompilerParams(
                dimension_semantics=("parallel",),
                vmem_limit_bytes=32 * 1024 * 1024,
            ),
        )(x_flat)

    try:
        out_flat = run(_center_pad_kernel_fused)
    except Exception:
        # In-register concatenate path unavailable on this Mosaic build; use
        # the border-stripe kernel (still a single interior write).
        out_flat = run(_center_pad_kernel_striped)

    return out_flat.reshape(N, C, Hp, Wp)


if __name__ == "__main__":
    key = jax.random.PRNGKey(0)
    # Small NCHW input consistent with the module's expected conv-style input.
    x = jax.random.normal(key, (2, 4, 16, 16), dtype=jnp.float32)

    out = center_padding(x, multiple=14)
    out = jax.block_until_ready(out)

    # Reference: plain-JAX centered zero padding (same semantics as F.pad with
    # left = pad // 2, right = pad - left, applied to W then H).
    pt, pb = _get_pad(x.shape[2], 14)
    pw_l, pw_r = _get_pad(x.shape[3], 14)
    ref = jnp.pad(x, ((0, 0), (0, 0), (pt, pb), (pw_l, pw_r)))

    assert out.shape == ref.shape, (out.shape, ref.shape)
    assert out.dtype == x.dtype
    assert bool(jnp.array_equal(out, ref)), "mismatch vs reference padding"

    print("KERNEL_OK")
</pallas_src>

<mosaic_0001>
module attributes {stable_mosaic.version = 11 : i64} {
  func.func @_center_pad_kernel_fused(%arg0: i32, %arg1: memref<4x16x16xf32, #tpu.memory_space<vmem>>, %arg2: memref<4x28x28xf32, #tpu.memory_space<vmem>>) attributes {dimension_semantics = [#tpu.dimension_semantics<parallel>], iteration_bounds = array<i64: 2>, scalar_prefetch = 0 : i64, scratch_operands = 0 : i64, tpu.core_type = #tpu.core_type<tc>, window_params = [{transform_indices = @transform_0, window_bounds = array<i64: 4, 16, 16>}, {transform_indices = @transform_1, window_bounds = array<i64: 4, 28, 28>}]} {
    %c0 = arith.constant 0 : index
    %c0_0 = arith.constant 0 : index
    %c0_1 = arith.constant 0 : index
    %0 = vector.load %arg1[%c0, %c0_0, %c0_1] : memref<4x16x16xf32, #tpu.memory_space<vmem>>, vector<4x16x16xf32>
    %cst = arith.constant 0.000000e+00 : f32
    %1 = vector.broadcast %cst : f32 to vector<4x16x6xf32>
    %cst_2 = arith.constant 0.000000e+00 : f32
    %2 = vector.broadcast %cst_2 : f32 to vector<4x16x6xf32>
    %3 = tpu.concatenate %1, %0, %2 in 2 : vector<4x16x6xf32>, vector<4x16x16xf32>, vector<4x16x6xf32> -> vector<4x16x28xf32>
    %cst_3 = arith.constant 0.000000e+00 : f32
    %4 = vector.broadcast %cst_3 : f32 to vector<4x6x28xf32>
    %cst_4 = arith.constant 0.000000e+00 : f32
    %5 = vector.broadcast %cst_4 : f32 to vector<4x6x28xf32>
    %6 = tpu.concatenate %4, %3, %5 in 1 : vector<4x6x28xf32>, vector<4x16x28xf32>, vector<4x6x28xf32> -> vector<4x28x28xf32>
    %c0_5 = arith.constant 0 : index
    %c0_6 = arith.constant 0 : index
    %c0_7 = arith.constant 0 : index
    %7 = vector.load %arg2[%c0_5, %c0_6, %c0_7] : memref<4x28x28xf32, #tpu.memory_space<vmem>>, vector<4x28x28xf32>
    tpu.vector_store %arg2[%c0_5, %c0_6, %c0_7], %6 {strides = array<i32>} : memref<4x28x28xf32, #tpu.memory_space<vmem>>, vector<4x28x28xf32>,
    return
  }
  func.func @transform_0(%arg0: i32) -> (i32, i32, i32) {
    %c0_i32 = arith.constant 0 : i32
    %c0_i32_0 = arith.constant 0 : i32
    %c0_i32_1 = arith.constant 0 : i32
    return %arg0, %c0_i32, %c0_i32_0 : i32, i32, i32
  }
  func.func @transform_1(%arg0: i32) -> (i32, i32, i32) {
    %c0_i32 = arith.constant 0 : i32
    %c0_i32_0 = arith.constant 0 : i32
    %c0_i32_1 = arith.constant 0 : i32
    return %arg0, %c0_i32, %c0_i32_0 : i32, i32, i32
  }
}

module attributes {stable_mosaic.version = 11 : i64} {
  func.func @_center_pad_kernel_striped(%arg0: i32, %arg1: memref<4x16x16xf32, #tpu.memory_space<vmem>>, %arg2: memref<4x28x28xf32, #tpu.memory_space<vmem>>) attributes {dimension_semantics = [#tpu.dimension_semantics<parallel>], iteration_bounds = array<i64: 2>, scalar_prefetch = 0 : i64, scratch_operands = 0 : i64, tpu.core_type = #tpu.core_type<tc>, window_params = [{transform_indices = @transform_0, window_bounds = array<i64: 4, 16, 16>}, {transform_indices = @transform_1, window_bounds = array<i64: 4, 28, 28>}]} {
    %cst = arith.constant 0.000000e+00 : f32
    %0 = vector.broadcast %cst : f32 to vector<4x6x28xf32>
    %c0 = arith.constant 0 : index
    %c0_0 = arith.constant 0 : index
    %c0_1 = arith.constant 0 : index
    %1 = vector.load %arg2[%c0, %c0_0, %c0_1] : memref<4x28x28xf32, #tpu.memory_space<vmem>>, vector<4x6x28xf32>
    tpu.vector_store %arg2[%c0, %c0_0, %c0_1], %0 {strides = array<i32>} : memref<4x28x28xf32, #tpu.memory_space<vmem>>, vector<4x6x28xf32>,
    %cst_2 = arith.constant 0.000000e+00 : f32
    %2 = vector.broadcast %cst_2 : f32 to vector<4x6x28xf32>
    %c0_3 = arith.constant 0 : index
    %c22 = arith.constant 22 : index
    %c0_4 = arith.constant 0 : index
    %3 = vector.load %arg2[%c0_3, %c22, %c0_4] : memref<4x28x28xf32, #tpu.memory_space<vmem>>, vector<4x6x28xf32>
    tpu.vector_store %arg2[%c0_3, %c22, %c0_4], %2 {strides = array<i32>} : memref<4x28x28xf32, #tpu.memory_space<vmem>>, vector<4x6x28xf32>,
    %cst_5 = arith.constant 0.000000e+00 : f32
    %4 = vector.broadcast %cst_5 : f32 to vector<4x28x6xf32>
    %c0_6 = arith.constant 0 : index
    %c0_7 = arith.constant 0 : index
    %c0_8 = arith.constant 0 : index
    %5 = vector.load %arg2[%c0_6, %c0_7, %c0_8] : memref<4x28x28xf32, #tpu.memory_space<vmem>>, vector<4x28x6xf32>
    tpu.vector_store %arg2[%c0_6, %c0_7, %c0_8], %4 {strides = array<i32>} : memref<4x28x28xf32, #tpu.memory_space<vmem>>, vector<4x28x6xf32>,
    %cst_9 = arith.constant 0.000000e+00 : f32
    %6 = vector.broadcast %cst_9 : f32 to vector<4x28x6xf32>
    %c0_10 = arith.constant 0 : index
    %c0_11 = arith.constant 0 : index
    %c22_12 = arith.constant 22 : index
    %7 = vector.load %arg2[%c0_10, %c0_11, %c22_12] : memref<4x28x28xf32, #tpu.memory_space<vmem>>, vector<4x28x6xf32>
    tpu.vector_store %arg2[%c0_10, %c0_11, %c22_12], %6 {strides = array<i32>} : memref<4x28x28xf32, #tpu.memory_space<vmem>>, vector<4x28x6xf32>,
    %c0_13 = arith.constant 0 : index
    %c0_14 = arith.constant 0 : index
    %c0_15 = arith.constant 0 : index
    %8 = vector.load %arg1[%c0_13, %c0_14, %c0_15] : memref<4x16x16xf32, #tpu.memory_space<vmem>>, vector<4x16x16xf32>
    %c0_16 = arith.constant 0 : index
    %c6 = arith.constant 6 : index
    %c6_17 = arith.constant 6 : index
    %9 = vector.load %arg2[%c0_16, %c6, %c6_17] : memref<4x28x28xf32, #tpu.memory_space<vmem>>, vector<4x16x16xf32>
    tpu.vector_store %arg2[%c0_16, %c6, %c6_17], %8 {strides = array<i32>} : memref<4x28x28xf32, #tpu.memory_space<vmem>>, vector<4x16x16xf32>,
    return
  }
  func.func @transform_0(%arg0: i32) -> (i32, i32, i32) {
    %c0_i32 = arith.constant 0 : i32
    %c0_i32_0 = arith.constant 0 : i32
    %c0_i32_1 = arith.constant 0 : i32
    return %arg0, %c0_i32, %c0_i32_0 : i32, i32, i32
  }
  func.func @transform_1(%arg0: i32) -> (i32, i32, i32) {
    %c0_i32 = arith.constant 0 : i32
    %c0_i32_0 = arith.constant 0 : i32
    %c0_i32_1 = arith.constant 0 : i32
    return %arg0, %c0_i32, %c0_i32_0 : i32, i32, i32
  }
}

</mosaic_0001>

<llo_original>
// kernel: tpu_custom_call.1
$region0: #{tpu_custom_call.1}
  #allocation0 [shape = 'u32[]', space=smem, size = 0x4, offset = 0x4, fixed_abs, tag = 'smem constant byte address 0x4 - core index']
  #allocation1 [shape = 'u32[144,128]{1,0:T(1,128)}', space=vmem, size = 0x12000, scoped, tag = 'internal scratch']
  %s0 = inlined_call_operand.hbm [shape: f32[8,16,16], index: 0, kind: input, shape index: {}]
  %s1 = inlined_call_operand.vmem [shape: f32[8,28,28], index: 1, kind: output, shape index: {}]
  %s2 = sld [smem:[#allocation0]]
  $region41: #{tpu_custom_call.1} parent=0
    _
  %s4 = ssub.s32 1, %s2
  %s5 = scalar_select 0, %s4, %s2
  $region1: #{tpu_custom_call.1} parent=0
    #allocation2 [shape = 'u8[65536]{0}', space=vmem, size = 0x10000, scoped, tag = 'input window, operand 0']
    #allocation3 [shape = 's32[2]{0}', space=sflag, size = 0x8, scoped, tag = 'scoped memory for tpu_custom_call.1']
    %6 = vsyncpa [#allocation3], 0
    %s7 = scalar_lea.sflag [#allocation3], 1
    %8 = vsyncpa %s7, 0
    loop: start=0, step=1, limit=4
    $region2: #{tpu_custom_call.1} parent=1 // loop_pre_header
      _
    $region3: #{tpu_custom_call.1} parent=1 // loop_header
      %s10 = sphi 0, %s14
      %p11 = scmp.ge.s32.totalorder %s10, 4
      %s20 = sphi 0, %s22
      %s23 = sphi 0, %s20
      %s24 = sphi 0, %s23
      %s40 = sphi 0, %s24
      %s46 = sphi 0, %s48
      %s49 = sphi 0, %s46
      %s50 = sphi 0, %s49
      %s66 = sphi 0, %s50
    $region4: #{tpu_custom_call.1} parent=1 // loop_header_branch
      %13 = sbr.rel (%p11) target = $region8
    $region5: #{tpu_custom_call.1} parent=1 // loop_body
      %s15 = ssub.s32 %s10, 1
      %s16 = ssub.s32 %s10, 2
      %s17 = sadd.s32 %s10, 1
      %s18 = ssub.s32 %s10, %s17
      %p19 = scmp.eq.s32.totalorder %s18, 0
      %s21 = sadd.s32 %s20, 1
      %s22 = scalar_select %p19, %s20, %s21
      %p25 = pneg %p19
      %p26 = scmp.eq.s32.totalorder %s10, 1
      %p27 = por %p25, %p26
      %p28 = scmp.ne.s32.totalorder %s20, %s23
      %p29 = scmp.eq.s32.totalorder %s10, 0
      %p30 = por %p28, %p29
      %p31 = scmp.ne.s32.totalorder %s20, %s23
      %p32 = scmp.eq.s32.totalorder %s15, 1
      %p33 = por %p31, %p32
      %p34 = scmp.ne.s32.totalorder %s23, %s24
      %p35 = scmp.eq.s32.totalorder %s15, 0
      %p36 = por %p34, %p35
      %p37 = scmp.ne.s32.totalorder %s23, %s24
      %p38 = scmp.eq.s32.totalorder %s16, 1
      %p39 = por %p37, %p38
      %p41 = scmp.ne.s32.totalorder %s24, %s40
      %p42 = scmp.eq.s32.totalorder %s16, 0
      %p43 = por %p41, %p42
      %s44 = ssub.s32 %s10, %s17
      %p45 = scmp.eq.s32.totalorder %s44, 0
      %s47 = sadd.s32 %s46, 1
      %s48 = scalar_select %p45, %s46, %s47
      %p51 = pneg %p45
      %p52 = scmp.eq.s32.totalorder %s10, 1
      %p53 = por %p51, %p52
      %p54 = scmp.ne.s32.totalorder %s46, %s49
      %p55 = scmp.eq.s32.totalorder %s10, 0
      %p56 = por %p54, %p55
      %p57 = scmp.ne.s32.totalorder %s46, %s49
      %p58 = scmp.eq.s32.totalorder %s15, 1
      %p59 = por %p57, %p58
      %p60 = scmp.ne.s32.totalorder %s49, %s50
      %p61 = scmp.eq.s32.totalorder %s15, 0
      %p62 = por %p60, %p61
      %p63 = scmp.ne.s32.totalorder %s49, %s50
      %p64 = scmp.eq.s32.totalorder %s16, 1
      %p65 = por %p63, %p64
      %p67 = scmp.ne.s32.totalorder %s50, %s66
      %p68 = scmp.eq.s32.totalorder %s16, 0
      %p69 = por %p67, %p68
      %p70 = scmp.le.s32.totalorder 1, %s10
      %p71 = scmp.lt.s32.totalorder %s10, 3
      %p72 = pnand %p70, %p71
      %p73 = pneg %p72
      // Predicated region
      $region9: #{tpu_custom_call.1} parent=5 // pred_check
        _
      $region10: #{tpu_custom_call.1} parent=5 // pred_check_branch
        %75 = sbr.rel (%p72) target = $region12
      $region11: #{tpu_custom_call.1} parent=5 // pred_region
        %s76 = ssub.s32 %s10, 1
      $region12: #{tpu_custom_call.1} parent=5 // pred_fallthru
        _
      %p77 = scmp.lt.s32.totalorder %s10, 2
      // Predicated region
      $region13: #{tpu_custom_call.1} parent=5 // pred_check
        %p78 = pneg %p77
      $region14: #{tpu_custom_call.1} parent=5 // pred_check_branch
        %80 = sbr.rel (%p78) target = $region16
      $region15: #{tpu_custom_call.1} parent=5 // pred_region
        // Predicated region
        $region17: #{tpu_custom_call.1} parent=15 // pred_check
          %p81 = pneg %p30
        $region18: #{tpu_custom_call.1} parent=15 // pred_check_branch
          %83 = sbr.rel (%p81) target = $region20
        $region19: #{tpu_custom_call.1} parent=15 // pred_region
          %s84 = sand.u32 %s20, 1
          %s85 = scalar_lea.sflag [#allocation3], %s84
          %s86 = sand.u32 %s20, 1
          %s87 = smul.addr %s86, 64
          %s88 = scalar_lea.vmem [#allocation2], %s87
          %s89 = smul.u32 4, %s10
          %s91 = ssub.s32 1024, 1024
          %92 = vsyncadd %s85, %s91
          %s93 = smul.addr %s89, 2
          %s94 = smul.addr %s93, 128
          %s95 = scalar_lea.hbm %s0, %s94
          %s96 = sshll.u32 %s88, 4
          %s97 = int_to_ptr.vmem [resolvable:$true] %s96
          %102 = dma.hbm_to_vmem [thread:$0]  %s95, 1024, %s97, %s85, 128, 128, 8
        $region20: #{tpu_custom_call.1} parent=15 // pred_fallthru
          _
      $region16: #{tpu_custom_call.1} parent=5 // pred_fallthru
        _
      %p103 = scmp.le.s32.totalorder 1, %s10
      %p104 = scmp.lt.s32.totalorder %s10, 3
      %p105 = pnand %p103, %p104
      %p106 = pneg %p105
      // Predicated region
      $region21: #{tpu_custom_call.1} parent=5 // pred_check
        _
      $region22: #{tpu_custom_call.1} parent=5 // pred_check_branch
        %108 = sbr.rel (%p105) target = $region24
      $region23: #{tpu_custom_call.1} parent=5 // pred_region
        %s109 = ssub.s32 %s10, 1
        %s110 = sand.u32 %s23, 1
        %s111 = scalar_lea.sflag [#allocation3], %s110
        %s112 = sand.u32 %s23, 1
        %s113 = smul.addr %s112, 64
        %s114 = scalar_lea.vmem [#allocation2], %s113
        // Predicated region
        $region25: #{tpu_custom_call.1} parent=23 // pred_check
          %p115 = pneg %p36
        $region26: #{tpu_custom_call.1} parent=23 // pred_check_branch
          %117 = sbr.rel (%p115) target = $region28
        $region27: #{tpu_custom_call.1} parent=23 // pred_region
          %118 = dma.done %s111, 1024
        $region28: #{tpu_custom_call.1} parent=23 // pred_fallthru
          _
        %s119 = sand.u32 %s23, 1
        %s120 = scalar_lea.sflag [#allocation3], %s119
        %s121 = sand.u32 %s23, 1
        %s122 = smul.addr %s121, 64
        %s123 = scalar_lea.vmem [#allocation2], %s122
        %p124 = pneg %p36
        %p125 = pneg %p33
        %p126 = pneg %p62
        %p127 = pneg %p59
        %s128 = smul.u32 4, %s15
        %p129 = scmp.lt.s32.totalorder %s128, 7
        %s130 = scalar_select %p129, %s128, 7
        %s131 = smul.addr %s130, 4
        %s132 = smul.addr %s131, 8
        %s133 = scalar_lea.vmem %s1, %s132
        %s134 = smul.u32 4, %s15
        %s135 = smul.u32 4, %s15
        %p136 = scmp.lt.s32.totalorder %s135, 7
        %s137 = scalar_select %p136, %s135, 7
        %s138 = smul.addr %s137, 4
        %s139 = smul.addr %s138, 8
        %s140 = scalar_lea.vmem %s1, %s139
        %s141 = smul.u32 4, %s15
        %v142 = vld [vmem:[%s114] sm:$0xff]
        %v143 = vld [vmem:[%s114 + $0x8] sm:$0xff]
        %v144 = vld [vmem:[%s114 + $0x10] sm:$0xff]
        %v145 = vld [vmem:[%s114 + $0x18] sm:$0xff]
        %v146 = vld [vmem:[%s114 + $0x20] sm:$0xff]
        %v147 = vld [vmem:[%s114 + $0x28] sm:$0xff]
        %v148 = vld [vmem:[%s114 + $0x30] sm:$0xff]
        %v149 = vld [vmem:[%s114 + $0x38] sm:$0xff]
        %158 = vrot.lane.b32.xlu0 %v142, 6
        %v159 = vpop.permute.xlu0 %158
        %160 = vrot.lane.b32.xlu0 %v143, 6
        %v161 = vpop.permute.xlu0 %160
        %162 = vrot.lane.b32.xlu0 %v144, 6
        %v163 = vpop.permute.xlu0 %162
        %164 = vrot.lane.b32.xlu0 %v145, 6
        %v165 = vpop.permute.xlu0 %164
        %166 = vrot.lane.b32.xlu0 %v146, 6
        %v167 = vpop.permute.xlu0 %166
        %168 = vrot.lane.b32.xlu0 %v147, 6
        %v169 = vpop.permute.xlu0 %168
        %170 = vrot.lane.b32.xlu0 %v148, 6
        %v171 = vpop.permute.xlu0 %170
        %172 = vrot.lane.b32.xlu0 %v149, 6
        %v173 = vpop.permute.xlu0 %172
        %vm182 = vcmask 48128
        %v183 = vsel %vm182, 0.0, %v159
        %v184 = vsel %vm182, 0.0, %v161
        %v185 = vsel %vm182, 0.0, %v163
        %v186 = vsel %vm182, 0.0, %v165
        %v187 = vsel %vm182, 0.0, %v167
        %v188 = vsel %vm182, 0.0, %v169
        %v189 = vsel %vm182, 0.0, %v171
        %v190 = vsel %vm182, 0.0, %v173
        %vm191 = vcmask 179200
        %v192 = vsel %vm191, %v183, 0.0
        %v193 = vsel %vm191, %v184, 0.0
        %v194 = vsel %vm191, %v185, 0.0
        %v195 = vsel %vm191, %v186, 0.0
        %v196 = vsel %vm191, %v187, 0.0
        %v197 = vsel %vm191, %v188, 0.0
        %v198 = vsel %vm191, %v189, 0.0
        %v199 = vsel %vm191, %v190, 0.0
        %vm208 = vcmask 1045504
        %v209 = vrot.slane %v192, 2
        %v210 = vrot.slane %v193, 2
        %v211 = vsel %vm208, %v209, %v210
        %v212 = vrot.slane %v194, 2
        %v213 = vrot.slane %v195, 2
        %v214 = vsel %vm208, %v212, %v213
        %v215 = vrot.slane %v196, 2
        %v216 = vrot.slane %v197, 2
        %v217 = vsel %vm208, %v215, %v216
        %v218 = vrot.slane %v198, 2
        %v219 = vrot.slane %v199, 2
        %v220 = vsel %vm208, %v218, %v219
        %v233 = vsel %vm208, 0.0, %v209
        %v234 = vsel %vm208, 0.0, %v212
        %v235 = vsel %vm208, 0.0, %v215
        %v236 = vsel %vm208, 0.0, %v218
        %v237 = vsel %vm208, %v210, 0.0
        %v238 = vsel %vm208, %v213, 0.0
        %v239 = vsel %vm208, %v216, 0.0
        %v240 = vsel %vm208, %v219, 0.0
        %vm241 = vcmask 228352
        %242 = vst.msk [vmem:[%s140] sm:$0xff] %vm241, %v233
        %243 = vst.msk [vmem:[%s140 + $0x8] sm:$0xff] %vm241, %v211
        %244 = vst.msk [vmem:[%s140 + $0x10] sm:$0xff] %vm241, %v237
        %vm245 = vcmask 224256
        %246 = vst.msk [vmem:[%s140 + $0x18] sm:$0xf] %vm245, 0.0
        %247 = vst.msk [vmem:[%s140 + $0x20] sm:$0xff] %vm241, %v234
        %248 = vst.msk [vmem:[%s140 + $0x28] sm:$0xff] %vm241, %v214
        %249 = vst.msk [vmem:[%s140 + $0x30] sm:$0xff] %vm241, %v238
        %250 = vst.msk [vmem:[%s140 + $0x38] sm:$0xf] %vm245, 0.0
        %251 = vst.msk [vmem:[%s140 + $0x40] sm:$0xff] %vm241, %v235
        %252 = vst.msk [vmem:[%s140 + $0x48] sm:$0xff] %vm241, %v217
        %253 = vst.msk [vmem:[%s140 + $0x50] sm:$0xff] %vm241, %v239
        %254 = vst.msk [vmem:[%s140 + $0x58] sm:$0xf] %vm245, 0.0
        %255 = vst.msk [vmem:[%s140 + $0x60] sm:$0xff] %vm241, %v236
        %256 = vst.msk [vmem:[%s140 + $0x68] sm:$0xff] %vm241, %v220
        %257 = vst.msk [vmem:[%s140 + $0x70] sm:$0xff] %vm241, %v240
        %258 = vst.msk [vmem:[%s140 + $0x78] sm:$0xf] %vm245, 0.0
        %s259 = smul.u32 4, %s15
        %p260 = scmp.lt.s32.totalorder %s259, 7
        %s261 = scalar_select %p260, %s259, 7
        %s262 = smul.addr %s261, 4
        %s263 = smul.addr %s262, 8
        %s264 = scalar_lea.vmem %s1, %s263
        // Predicated region
        $region29: #{tpu_custom_call.1} parent=23 // pred_check
          %p265 = pneg %p59
        $region30: #{tpu_custom_call.1} parent=23 // pred_check_branch
          %267 = sbr.rel (%p265) target = $region32
        $region31: #{tpu_custom_call.1} parent=23 // pred_region
          %s268 = smul.u32 4, %s15
        $region32: #{tpu_custom_call.1} parent=23 // pred_fallthru
          _
      $region24: #{tpu_custom_call.1} parent=5 // pred_fallthru
        _
      %p269 = scmp.le.s32.totalorder 2, %s10
      // Predicated region
      $region33: #{tpu_custom_call.1} parent=5 // pred_check
        %p270 = pneg %p269
      $region34: #{tpu_custom_call.1} parent=5 // pred_check_branch
        %272 = sbr.rel (%p270) target = $region36
      $region35: #{tpu_custom_call.1} parent=5 // pred_region
        %s273 = ssub.s32 %s10, 2
        // Predicated region
        $region37: #{tpu_custom_call.1} parent=35 // pred_check
          %p274 = pneg %p65
        $region38: #{tpu_custom_call.1} parent=35 // pred_check_branch
          %276 = sbr.rel (%p274) target = $region40
        $region39: #{tpu_custom_call.1} parent=35 // pred_region
          %s277 = smul.u32 4, %s16
          %p278 = scmp.lt.s32.totalorder %s277, 7
          %s279 = scalar_select %p278, %s277, 7
          %s280 = smul.addr %s279, 4
          %s281 = smul.addr %s280, 8
          %s282 = scalar_lea.vmem %s1, %s281
        $region40: #{tpu_custom_call.1} parent=35 // pred_fallthru
          _
      $region36: #{tpu_custom_call.1} parent=5 // pred_fallthru
        _
    $region6: #{tpu_custom_call.1} parent=1 // loop_footer
      %s14 = sadd.s32 1, %s10
    $region7: #{tpu_custom_call.1} parent=1 // loop_footer_branch
      %9 = sbr.rel target = $region3
    $region8: #{tpu_custom_call.1} parent=1 // loop_exit
      _
    %283 = vsyncpa [#allocation3], 1
    %s284 = scalar_lea.sflag [#allocation3], 1
    %285 = vsyncpa %s284, 1

// kernel: tpu_custom_call.1
$region0: #{tpu_custom_call.1}
  #allocation0 [shape = 'u32[]', space=smem, size = 0x4, offset = 0x4, fixed_abs, tag = 'smem constant byte address 0x4 - core index']
  #allocation1 [shape = 'u32[144,128]{1,0:T(1,128)}', space=vmem, size = 0x12000, scoped, tag = 'internal scratch']
  %s0 = inlined_call_operand.hbm [shape: f32[8,16,16], index: 0, kind: input, shape index: {}]
  %s1 = inlined_call_operand.vmem [shape: f32[8,28,28], index: 1, kind: output, shape index: {}]
  %s2 = sld [smem:[#allocation0]]
  $region41: #{tpu_custom_call.1} parent=0
    _
  %s4 = ssub.s32 1, %s2
  %s5 = scalar_select 0, %s4, %s2
  $region1: #{tpu_custom_call.1} parent=0
    #allocation2 [shape = 'u8[65536]{0}', space=vmem, size = 0x10000, scoped, tag = 'input window, operand 0']
    #allocation3 [shape = 's32[2]{0}', space=sflag, size = 0x8, scoped, tag = 'scoped memory for tpu_custom_call.1']
    %6 = vsyncpa [#allocation3], 0
    %s7 = scalar_lea.sflag [#allocation3], 1
    %8 = vsyncpa %s7, 0
    loop: start=0, step=1, limit=4
    $region2: #{tpu_custom_call.1} parent=1 // loop_pre_header
      _
    $region3: #{tpu_custom_call.1} parent=1 // loop_header
      %s10 = sphi 0, %s14
      %p11 = scmp.ge.s32.totalorder %s10, 4
      %s20 = sphi 0, %s22
      %s23 = sphi 0, %s20
      %s24 = sphi 0, %s23
      %s40 = sphi 0, %s24
      %s46 = sphi 0, %s48
      %s49 = sphi 0, %s46
      %s50 = sphi 0, %s49
      %s66 = sphi 0, %s50
    $region4: #{tpu_custom_call.1} parent=1 // loop_header_branch
      %13 = sbr.rel (%p11) target = $region8
    $region5: #{tpu_custom_call.1} parent=1 // loop_body
      %s15 = ssub.s32 %s10, 1
      %s16 = ssub.s32 %s10, 2
      %s17 = sadd.s32 %s10, 1
      %s18 = ssub.s32 %s10, %s17
      %p19 = scmp.eq.s32.totalorder %s18, 0
      %s21 = sadd.s32 %s20, 1
      %s22 = scalar_select %p19, %s20, %s21
      %p25 = pneg %p19
      %p26 = scmp.eq.s32.totalorder %s10, 1
      %p27 = por %p25, %p26
      %p28 = scmp.ne.s32.totalorder %s20, %s23
      %p29 = scmp.eq.s32.totalorder %s10, 0
      %p30 = por %p28, %p29
      %p31 = scmp.ne.s32.totalorder %s20, %s23
      %p32 = scmp.eq.s32.totalorder %s15, 1
      %p33 = por %p31, %p32
      %p34 = scmp.ne.s32.totalorder %s23, %s24
      %p35 = scmp.eq.s32.totalorder %s15, 0
      %p36 = por %p34, %p35
      %p37 = scmp.ne.s32.totalorder %s23, %s24
      %p38 = scmp.eq.s32.totalorder %s16, 1
      %p39 = por %p37, %p38
      %p41 = scmp.ne.s32.totalorder %s24, %s40
      %p42 = scmp.eq.s32.totalorder %s16, 0
      %p43 = por %p41, %p42
      %s44 = ssub.s32 %s10, %s17
      %p45 = scmp.eq.s32.totalorder %s44, 0
      %s47 = sadd.s32 %s46, 1
      %s48 = scalar_select %p45, %s46, %s47
      %p51 = pneg %p45
      %p52 = scmp.eq.s32.totalorder %s10, 1
      %p53 = por %p51, %p52
      %p54 = scmp.ne.s32.totalorder %s46, %s49
      %p55 = scmp.eq.s32.totalorder %s10, 0
      %p56 = por %p54, %p55
      %p57 = scmp.ne.s32.totalorder %s46, %s49
      %p58 = scmp.eq.s32.totalorder %s15, 1
      %p59 = por %p57, %p58
      %p60 = scmp.ne.s32.totalorder %s49, %s50
      %p61 = scmp.eq.s32.totalorder %s15, 0
      %p62 = por %p60, %p61
      %p63 = scmp.ne.s32.totalorder %s49, %s50
      %p64 = scmp.eq.s32.totalorder %s16, 1
      %p65 = por %p63, %p64
      %p67 = scmp.ne.s32.totalorder %s50, %s66
      %p68 = scmp.eq.s32.totalorder %s16, 0
      %p69 = por %p67, %p68
      %p70 = scmp.le.s32.totalorder 1, %s10
      %p71 = scmp.lt.s32.totalorder %s10, 3
      %p72 = pnand %p70, %p71
      %p73 = pneg %p72
      // Predicated region
      $region9: #{tpu_custom_call.1} parent=5 // pred_check
        _
      $region10: #{tpu_custom_call.1} parent=5 // pred_check_branch
        %75 = sbr.rel (%p72) target = $region12
      $region11: #{tpu_custom_call.1} parent=5 // pred_region
        %s76 = ssub.s32 %s10, 1
      $region12: #{tpu_custom_call.1} parent=5 // pred_fallthru
        _
      %p77 = scmp.lt.s32.totalorder %s10, 2
      // Predicated region
      $region13: #{tpu_custom_call.1} parent=5 // pred_check
        %p78 = pneg %p77
      $region14: #{tpu_custom_call.1} parent=5 // pred_check_branch
        %80 = sbr.rel (%p78) target = $region16
      $region15: #{tpu_custom_call.1} parent=5 // pred_region
        // Predicated region
        $region17: #{tpu_custom_call.1} parent=15 // pred_check
          %p81 = pneg %p30
        $region18: #{tpu_custom_call.1} parent=15 // pred_check_branch
          %83 = sbr.rel (%p81) target = $region20
        $region19: #{tpu_custom_call.1} parent=15 // pred_region
          %s84 = sand.u32 %s20, 1
          %s85 = scalar_lea.sflag [#allocation3], %s84
          %s86 = sand.u32 %s20, 1
          %s87 = smul.addr %s86, 64
          %s88 = scalar_lea.vmem [#allocation2], %s87
          %s89 = smul.u32 4, %s10
          %s91 = ssub.s32 1024, 1024
          %92 = vsyncadd %s85, %s91
          %s93 = smul.addr %s89, 2
          %s94 = smul.addr %s93, 128
          %s95 = scalar_lea.hbm %s0, %s94
          %s96 = sshll.u32 %s88, 4
          %s97 = int_to_ptr.vmem [resolvable:$true] %s96
          %102 = dma.hbm_to_vmem [thread:$0]  %s95, 1024, %s97, %s85, 128, 128, 8
        $region20: #{tpu_custom_call.1} parent=15 // pred_fallthru
          _
      $region16: #{tpu_custom_call.1} parent=5 // pred_fallthru
        _
      %p103 = scmp.le.s32.totalorder 1, %s10
      %p104 = scmp.lt.s32.totalorder %s10, 3
      %p105 = pnand %p103, %p104
      %p106 = pneg %p105
      // Predicated region
      $region21: #{tpu_custom_call.1} parent=5 // pred_check
        _
      $region22: #{tpu_custom_call.1} parent=5 // pred_check_branch
        %108 = sbr.rel (%p105) target = $region24
      $region23: #{tpu_custom_call.1} parent=5 // pred_region
        %s109 = ssub.s32 %s10, 1
        %s110 = sand.u32 %s23, 1
        %s111 = scalar_lea.sflag [#allocation3], %s110
        %s112 = sand.u32 %s23, 1
        %s113 = smul.addr %s112, 64
        %s114 = scalar_lea.vmem [#allocation2], %s113
        // Predicated region
        $region25: #{tpu_custom_call.1} parent=23 // pred_check
          %p115 = pneg %p36
        $region26: #{tpu_custom_call.1} parent=23 // pred_check_branch
          %117 = sbr.rel (%p115) target = $region28
        $region27: #{tpu_custom_call.1} parent=23 // pred_region
          %118 = dma.done %s111, 1024
        $region28: #{tpu_custom_call.1} parent=23 // pred_fallthru
          _
        %s119 = sand.u32 %s23, 1
        %s120 = scalar_lea.sflag [#allocation3], %s119
        %s121 = sand.u32 %s23, 1
        %s122 = smul.addr %s121, 64
        %s123 = scalar_lea.vmem [#allocation2], %s122
        %p124 = pneg %p36
        %p125 = pneg %p33
        %p126 = pneg %p62
        %p127 = pneg %p59
        %s128 = smul.u32 4, %s15
        %p129 = scmp.lt.s32.totalorder %s128, 7
        %s130 = scalar_select %p129, %s128, 7
        %s131 = smul.addr %s130, 4
        %s132 = smul.addr %s131, 8
        %s133 = scalar_lea.vmem %s1, %s132
        %s134 = smul.u32 4, %s15
        %s135 = smul.u32 4, %s15
        %p136 = scmp.lt.s32.totalorder %s135, 7
        %s137 = scalar_select %p136, %s135, 7
        %s138 = smul.addr %s137, 4
        %s139 = smul.addr %s138, 8
        %s140 = scalar_lea.vmem %s1, %s139
        %s141 = smul.u32 4, %s15
        %vm142 = vcmask 226304
        %143 = vst.msk [vmem:[%s140] sm:$0x3f] %vm142, 0.0
        %144 = vst.msk [vmem:[%s140 + $0x20] sm:$0x3f] %vm142, 0.0
        %145 = vst.msk [vmem:[%s140 + $0x40] sm:$0x3f] %vm142, 0.0
        %146 = vst.msk [vmem:[%s140 + $0x60] sm:$0x3f] %vm142, 0.0
        %147 = vst.msk [vmem:[%s140 + $0x16] sm:$0x3f] %vm142, 0.0
        %148 = vst.msk [vmem:[%s140 + $0x36] sm:$0x3f] %vm142, 0.0
        %149 = vst.msk [vmem:[%s140 + $0x56] sm:$0x3f] %vm142, 0.0
        %150 = vst.msk [vmem:[%s140 + $0x76] sm:$0x3f] %vm142, 0.0
        %vm151 = vcmask 48128
        %152 = vst.msk [vmem:[%s140] sm:$0xff] %vm151, 0.0
        %153 = vst.msk [vmem:[%s140 + $0x8] sm:$0xff] %vm151, 0.0
        %154 = vst.msk [vmem:[%s140 + $0x10] sm:$0xff] %vm151, 0.0
        %vm155 = vcmask 44032
        %156 = vst.msk [vmem:[%s140 + $0x18] sm:$0xf] %vm155, 0.0
        %157 = vst.msk [vmem:[%s140 + $0x20] sm:$0xff] %vm151, 0.0
        %158 = vst.msk [vmem:[%s140 + $0x28] sm:$0xff] %vm151, 0.0
        %159 = vst.msk [vmem:[%s140 + $0x30] sm:$0xff] %vm151, 0.0
        %160 = vst.msk [vmem:[%s140 + $0x38] sm:$0xf] %vm155, 0.0
        %161 = vst.msk [vmem:[%s140 + $0x40] sm:$0xff] %vm151, 0.0
        %162 = vst.msk [vmem:[%s140 + $0x48] sm:$0xff] %vm151, 0.0
        %163 = vst.msk [vmem:[%s140 + $0x50] sm:$0xff] %vm151, 0.0
        %164 = vst.msk [vmem:[%s140 + $0x58] sm:$0xf] %vm155, 0.0
        %165 = vst.msk [vmem:[%s140 + $0x60] sm:$0xff] %vm151, 0.0
        %166 = vst.msk [vmem:[%s140 + $0x68] sm:$0xff] %vm151, 0.0
        %167 = vst.msk [vmem:[%s140 + $0x70] sm:$0xff] %vm151, 0.0
        %168 = vst.msk [vmem:[%s140 + $0x78] sm:$0xf] %vm155, 0.0
        %vm169 = vcmask 228528
        %170 = vst.msk [vmem:[%s140] sm:$0xff] %vm169, 0.0
        %171 = vst.msk [vmem:[%s140 + $0x8] sm:$0xff] %vm169, 0.0
        %172 = vst.msk [vmem:[%s140 + $0x10] sm:$0xff] %vm169, 0.0
        %vm173 = vcmask 224432
        %174 = vst.msk [vmem:[%s140 + $0x18] sm:$0xf] %vm173, 0.0
        %175 = vst.msk [vmem:[%s140 + $0x20] sm:$0xff] %vm169, 0.0
        %176 = vst.msk [vmem:[%s140 + $0x28] sm:$0xff] %vm169, 0.0
        %177 = vst.msk [vmem:[%s140 + $0x30] sm:$0xff] %vm169, 0.0
        %178 = vst.msk [vmem:[%s140 + $0x38] sm:$0xf] %vm173, 0.0
        %179 = vst.msk [vmem:[%s140 + $0x40] sm:$0xff] %vm169, 0.0
        %180 = vst.msk [vmem:[%s140 + $0x48] sm:$0xff] %vm169, 0.0
        %181 = vst.msk [vmem:[%s140 + $0x50] sm:$0xff] %vm169, 0.0
        %182 = vst.msk [vmem:[%s140 + $0x58] sm:$0xf] %vm173, 0.0
        %183 = vst.msk [vmem:[%s140 + $0x60] sm:$0xff] %vm169, 0.0
        %184 = vst.msk [vmem:[%s140 + $0x68] sm:$0xff] %vm169, 0.0
        %185 = vst.msk [vmem:[%s140 + $0x70] sm:$0xff] %vm169, 0.0
        %186 = vst.msk [vmem:[%s140 + $0x78] sm:$0xf] %vm173, 0.0
        %v187 = vld [vmem:[%s114] sm:$0xff]
        %v188 = vld [vmem:[%s114 + $0x8] sm:$0xff]
        %v189 = vld [vmem:[%s114 + $0x10] sm:$0xff]
        %v190 = vld [vmem:[%s114 + $0x18] sm:$0xff]
        %v191 = vld [vmem:[%s114 + $0x20] sm:$0xff]
        %v192 = vld [vmem:[%s114 + $0x28] sm:$0xff]
        %v193 = vld [vmem:[%s114 + $0x30] sm:$0xff]
        %v194 = vld [vmem:[%s114 + $0x38] sm:$0xff]
        %203 = vrot.lane.b32.xlu0 %v187, 6
        %v204 = vpop.permute.xlu0 %203
        %205 = vrot.lane.b32.xlu0 %v188, 6
        %v206 = vpop.permute.xlu0 %205
        %207 = vrot.lane.b32.xlu0 %v189, 6
        %v208 = vpop.permute.xlu0 %207
        %209 = vrot.lane.b32.xlu0 %v190, 6
        %v210 = vpop.permute.xlu0 %209
        %211 = vrot.lane.b32.xlu0 %v191, 6
        %v212 = vpop.permute.xlu0 %211
        %213 = vrot.lane.b32.xlu0 %v192, 6
        %v214 = vpop.permute.xlu0 %213
        %215 = vrot.lane.b32.xlu0 %v193, 6
        %v216 = vpop.permute.xlu0 %215
        %217 = vrot.lane.b32.xlu0 %v194, 6
        %v218 = vpop.permute.xlu0 %217
        %vm227 = vcmask 179248
        %228 = vst.msk [vmem:[%s140 + $0x6] sm:$0xff] %vm227, %v204
        %229 = vst.msk [vmem:[%s140 + $0xe] sm:$0xff] %vm227, %v206
        %230 = vst.msk [vmem:[%s140 + $0x26] sm:$0xff] %vm227, %v208
        %231 = vst.msk [vmem:[%s140 + $0x2e] sm:$0xff] %vm227, %v210
        %232 = vst.msk [vmem:[%s140 + $0x46] sm:$0xff] %vm227, %v212
        %233 = vst.msk [vmem:[%s140 + $0x4e] sm:$0xff] %vm227, %v214
        %234 = vst.msk [vmem:[%s140 + $0x66] sm:$0xff] %vm227, %v216
        %235 = vst.msk [vmem:[%s140 + $0x6e] sm:$0xff] %vm227, %v218
        %s236 = smul.u32 4, %s15
        %p237 = scmp.lt.s32.totalorder %s236, 7
        %s238 = scalar_select %p237, %s236, 7
        %s239 = smul.addr %s238, 4
        %s240 = smul.addr %s239, 8
        %s241 = scalar_lea.vmem %s1, %s240
        // Predicated region
        $region29: #{tpu_custom_call.1} parent=23 // pred_check
          %p242 = pneg %p59
        $region30: #{tpu_custom_call.1} parent=23 // pred_check_branch
          %244 = sbr.rel (%p242) target = $region32
        $region31: #{tpu_custom_call.1} parent=23 // pred_region
          %s245 = smul.u32 4, %s15
        $region32: #{tpu_custom_call.1} parent=23 // pred_fallthru
          _
      $region24: #{tpu_custom_call.1} parent=5 // pred_fallthru
        _
      %p246 = scmp.le.s32.totalorder 2, %s10
      // Predicated region
      $region33: #{tpu_custom_call.1} parent=5 // pred_check
        %p247 = pneg %p246
      $region34: #{tpu_custom_call.1} parent=5 // pred_check_branch
        %249 = sbr.rel (%p247) target = $region36
      $region35: #{tpu_custom_call.1} parent=5 // pred_region
        %s250 = ssub.s32 %s10, 2
        // Predicated region
        $region37: #{tpu_custom_call.1} parent=35 // pred_check
          %p251 = pneg %p65
        $region38: #{tpu_custom_call.1} parent=35 // pred_check_branch
          %253 = sbr.rel (%p251) target = $region40
        $region39: #{tpu_custom_call.1} parent=35 // pred_region
          %s254 = smul.u32 4, %s16
          %p255 = scmp.lt.s32.totalorder %s254, 7
          %s256 = scalar_select %p255, %s254, 7
          %s257 = smul.addr %s256, 4
          %s258 = smul.addr %s257, 8
          %s259 = scalar_lea.vmem %s1, %s258
        $region40: #{tpu_custom_call.1} parent=35 // pred_fallthru
          _
      $region36: #{tpu_custom_call.1} parent=5 // pred_fallthru
        _
    $region6: #{tpu_custom_call.1} parent=1 // loop_footer
      %s14 = sadd.s32 1, %s10
    $region7: #{tpu_custom_call.1} parent=1 // loop_footer_branch
      %9 = sbr.rel target = $region3
    $region8: #{tpu_custom_call.1} parent=1 // loop_exit
      _
    %260 = vsyncpa [#allocation3], 1
    %s261 = scalar_lea.sflag [#allocation3], 1
    %262 = vsyncpa %s261, 1

</llo_original>
